<compile_context>
chip_gen: v7x
topology: tpu7x:2x2x1
jax: 0.10.0
libtpu: 0.0.40
codegen_flags: <defaults>
</compile_context>

<pallas_src>
import functools

import jax
import jax.numpy as jnp
from jax.experimental import pallas as pl
from jax.experimental.pallas import tpu as pltpu


def _ffn_kernel(g, x_ref, w1_ref, b1_ref, w2_ref, b2_ref, gamma_ref, beta_ref,
                pool_ref, o_ref):
    """One (tm, L) tile of packed rows.  L = g * d_model, each row holds g tokens."""
    x = x_ref[...]                                                   # (tm, L), input dtype

    # linear1 + ReLU (dropout = identity at inference).  Dot in input dtype, f32 accumulate.
    h = jnp.dot(x, w1_ref[...], preferred_element_type=jnp.float32) + b1_ref[...]
    h = jnp.maximum(h, 0.0)

    # linear2
    y = jnp.dot(h.astype(w2_ref.dtype), w2_ref[...],
                preferred_element_type=jnp.float32) + b2_ref[...]

    # residual add (dropout1 = identity at inference); LayerNorm math in f32.
    z = x.astype(jnp.float32) + y                                    # (tm, L) f32

    if g > 1:
        # LayerNorm over each D-wide token chunk of the packed row.  Chunk statistics
        # are computed with the block pooling matrix P (P[i, j] = 1/D if i, j belong to
        # the same chunk, else 0), so no in-kernel reshape is required.  The pooling
        # dots use a bf16 hi/lo operand split so the statistics stay ~f32-exact
        # regardless of how the MXU decomposes f32 matmuls.
        p = pool_ref[...]

        def _pool(v):
            hi = v.astype(jnp.bfloat16).astype(jnp.float32)
            lo = v - hi
            return (jnp.dot(hi, p, preferred_element_type=jnp.float32)
                    + jnp.dot(lo, p, preferred_element_type=jnp.float32))

        mean = _pool(z)                                              # broadcasted per chunk
        zc = z - mean
        var = _pool(zc * zc)
    else:
        # Unpacked path (d_model already a multiple of 128, or lane-sparse fallback).
        mean = jnp.mean(z, axis=-1, keepdims=True)
        zc = z - mean
        var = jnp.mean(zc * zc, axis=-1, keepdims=True)

    out = zc * jax.lax.rsqrt(var + 1e-5) * gamma_ref[...] + beta_ref[...]
    o_ref[...] = out.astype(o_ref.dtype)


def feed_forward_layer(src, w1, b1, w2, b2, gamma, beta, *, tile_packed_rows=256):
    """Post-norm FeedForwardLayer (inference).  src: (seq, batch, d_model)."""
    S, B, D = src.shape
    F = w1.shape[1]
    N = S * B
    dt = src.dtype

    # Lane-packing factor: pack g consecutive tokens into one 128-wide row so all
    # loads/stores are lane-dense (biggest single lever for small d_model).
    if D % 128 == 0:
        g = 1                       # already lane-dense
    elif 128 % D == 0:
        g = 128 // D
    else:
        g = 1                       # lane-sparse fallback, still correct
    L = g * D
    Fg = g * F

    x = src.reshape(N, D)
    # Pad the token count to a multiple of g (for packing)...
    n_pad = pl.cdiv(N, g) * g
    if n_pad != N:
        x = jnp.pad(x, ((0, n_pad - N), (0, 0)))
    R = n_pad // g
    xp = x.reshape(R, L)            # free: row-major metadata reshape, no data movement

    # ...and the packed-row count to a multiple of the row tile (cdiv grid, no assert).
    sub = 8 if dt == jnp.float32 else 16
    r_up = pl.cdiv(R, sub) * sub
    tm = max(sub, (min(tile_packed_rows, r_up) // sub) * sub)
    r_pad = pl.cdiv(R, tm) * tm
    if r_pad != R:
        xp = jnp.pad(xp, ((0, r_pad - R), (0, 0)))

    # Packed parameters: block-diagonal weights act on each token chunk independently;
    # biases / LN params are tiled across the g chunks.  All built host-side (tiny).
    eye = jnp.eye(g, dtype=jnp.float32)
    w1p = jnp.kron(eye, w1.astype(jnp.float32)).astype(dt)               # (L, Fg)
    w2p = jnp.kron(eye, w2.astype(jnp.float32)).astype(dt)               # (Fg, L)
    b1p = jnp.tile(b1.astype(jnp.float32), g).reshape(1, Fg)
    b2p = jnp.tile(b2.astype(jnp.float32), g).reshape(1, L)
    gp = jnp.tile(gamma.astype(jnp.float32), g).reshape(1, L)
    bp = jnp.tile(beta.astype(jnp.float32), g).reshape(1, L)
    if g > 1:
        pool = jnp.kron(eye, jnp.full((D, D), 1.0 / D, dtype=jnp.float32))  # (L, L)
    else:
        pool = jnp.zeros((1, 1), jnp.float32)   # unused dummy on the g == 1 path

    grid = (r_pad // tm,)
    outp = pl.pallas_call(
        functools.partial(_ffn_kernel, g),
        out_shape=jax.ShapeDtypeStruct((r_pad, L), dt),
        grid_spec=pltpu.PrefetchScalarGridSpec(
            num_scalar_prefetch=0,
            grid=grid,
            in_specs=[
                pl.BlockSpec((tm, L), lambda i: (i, 0)),     # packed activation rows
                # Weights / params have a constant block index -> VMEM-resident across
                # the grid.  (At production d_model on v7x they could additionally be
                # single-buffered via pipeline_mode=pl.Buffered(1).)
                pl.BlockSpec((L, Fg), lambda i: (0, 0)),     # w1 (block-diag)
                pl.BlockSpec((1, Fg), lambda i: (0, 0)),     # b1
                pl.BlockSpec((Fg, L), lambda i: (0, 0)),     # w2 (block-diag)
                pl.BlockSpec((1, L), lambda i: (0, 0)),      # b2
                pl.BlockSpec((1, L), lambda i: (0, 0)),      # gamma
                pl.BlockSpec((1, L), lambda i: (0, 0)),      # beta
                pl.BlockSpec(pool.shape, lambda i: (0, 0)),  # LN pooling matrix
            ],
            out_specs=pl.BlockSpec((tm, L), lambda i: (i, 0)),
        ),
        compiler_params=pltpu.CompilerParams(
            # Row tiles are independent -> shard across v7x's two TensorCores.
            dimension_semantics=("parallel",),
            vmem_limit_bytes=32 * 1024 * 1024,
        ),
    )(xp, w1p, b1p, w2p, b2p, gp, bp, pool)

    out = outp[:R].reshape(n_pad, D)[:N].reshape(S, B, D)
    return out


def _reference(src, w1, b1, w2, b2, gamma, beta):
    x = src.astype(jnp.float32)
    h = jnp.maximum(x @ w1 + b1, 0.0)
    y = h @ w2 + b2
    z = x + y
    mean = jnp.mean(z, axis=-1, keepdims=True)
    var = jnp.mean((z - mean) ** 2, axis=-1, keepdims=True)
    return ((z - mean) * jax.lax.rsqrt(var + 1e-5)) * gamma + beta


if __name__ == "__main__":
    d_model, dim_ff = 32, 64

    key = jax.random.PRNGKey(0)
    k = jax.random.split(key, 8)

    # Linear weights stored as (in, out): x @ W here == x @ W.T with PyTorch's (out, in).
    w1 = jax.random.normal(k[1], (d_model, dim_ff), jnp.float32) * 0.05
    b1 = jax.random.normal(k[2], (dim_ff,), jnp.float32) * 0.01
    w2 = jax.random.normal(k[3], (dim_ff, d_model), jnp.float32) * 0.05
    b2 = jax.random.normal(k[4], (d_model,), jnp.float32) * 0.01
    gamma = 1.0 + 0.1 * jax.random.normal(k[5], (d_model,), jnp.float32)
    beta = 0.1 * jax.random.normal(k[6], (d_model,), jnp.float32)

    # Tolerance slightly looser than f32 eps to allow for MXU accumulation-order
    # differences between the kernel and the XLA reference.
    ATOL = RTOL = 2e-4

    # Case 1: tiny shape (seq=10, batch=3) -> exercises token padding (30 -> 32 rows).
    src1 = jax.random.normal(k[0], (10, 3, d_model), jnp.float32)
    out1 = jax.block_until_ready(feed_forward_layer(src1, w1, b1, w2, b2, gamma, beta))
    ref1 = _reference(src1, w1, b1, w2, b2, gamma, beta)
    assert out1.shape == src1.shape
    assert jnp.allclose(out1, ref1, atol=ATOL, rtol=RTOL), "case 1 mismatch vs reference"

    # Case 2: small tile override -> exercises a multi-step cdiv grid + row padding.
    src2 = jax.random.normal(k[7], (52, 5, d_model), jnp.float32)
    out2 = jax.block_until_ready(
        feed_forward_layer(src2, w1, b1, w2, b2, gamma, beta, tile_packed_rows=16))
    ref2 = _reference(src2, w1, b1, w2, b2, gamma, beta)
    assert out2.shape == src2.shape
    assert jnp.allclose(out2, ref2, atol=ATOL, rtol=RTOL), "case 2 mismatch vs reference"

    print("KERNEL_OK")
</pallas_src>

<mosaic_0001>
module attributes {stable_mosaic.version = 11 : i64} {
  func.func @_ffn_kernel(%arg0: i32, %arg1: memref<8x128xf32, #tpu.memory_space<vmem>>, %arg2: memref<128x256xf32, #tpu.memory_space<vmem>>, %arg3: memref<1x256xf32, #tpu.memory_space<vmem>>, %arg4: memref<256x128xf32, #tpu.memory_space<vmem>>, %arg5: memref<1x128xf32, #tpu.memory_space<vmem>>, %arg6: memref<1x128xf32, #tpu.memory_space<vmem>>, %arg7: memref<1x128xf32, #tpu.memory_space<vmem>>, %arg8: memref<128x128xf32, #tpu.memory_space<vmem>>, %arg9: memref<8x128xf32, #tpu.memory_space<vmem>>) attributes {dimension_semantics = [#tpu.dimension_semantics<parallel>], iteration_bounds = array<i64: 1>, scalar_prefetch = 0 : i64, scratch_operands = 0 : i64, tpu.core_type = #tpu.core_type<tc>, window_params = [{transform_indices = @transform_0, window_bounds = array<i64: 8, 128>}, {pipeline_mode = #tpu.pipeline_mode<synchronous>, transform_indices = @transform_1, window_bounds = array<i64: 128, 256>}, {pipeline_mode = #tpu.pipeline_mode<synchronous>, transform_indices = @transform_2, window_bounds = array<i64: 1, 256>}, {pipeline_mode = #tpu.pipeline_mode<synchronous>, transform_indices = @transform_3, window_bounds = array<i64: 256, 128>}, {pipeline_mode = #tpu.pipeline_mode<synchronous>, transform_indices = @transform_4, window_bounds = array<i64: 1, 128>}, {pipeline_mode = #tpu.pipeline_mode<synchronous>, transform_indices = @transform_5, window_bounds = array<i64: 1, 128>}, {pipeline_mode = #tpu.pipeline_mode<synchronous>, transform_indices = @transform_6, window_bounds = array<i64: 1, 128>}, {pipeline_mode = #tpu.pipeline_mode<synchronous>, transform_indices = @transform_7, window_bounds = array<i64: 128, 128>}, {transform_indices = @transform_8, window_bounds = array<i64: 8, 128>}]} {
    %c0 = arith.constant 0 : index
    %c0_0 = arith.constant 0 : index
    %0 = vector.load %arg1[%c0, %c0_0] : memref<8x128xf32, #tpu.memory_space<vmem>>, vector<8x128xf32>
    %c0_1 = arith.constant 0 : index
    %c0_2 = arith.constant 0 : index
    %1 = vector.load %arg2[%c0_1, %c0_2] : memref<128x256xf32, #tpu.memory_space<vmem>>, vector<128x256xf32>
    %cst = arith.constant dense<0.000000e+00> : vector<8x256xf32>
    %2 = tpu.matmul %0, %1, %cst {dimension_numbers = #tpu.dot_dimension_numbers<[1], [0], [0], [1], [0, 0, 1, 1], [], []>} : vector<8x128xf32>, vector<128x256xf32>, vector<8x256xf32> -> vector<8x256xf32>
    %c0_3 = arith.constant 0 : index
    %c0_4 = arith.constant 0 : index
    %3 = vector.load %arg3[%c0_3, %c0_4] : memref<1x256xf32, #tpu.memory_space<vmem>>, vector<1x256xf32>
    %4 = vector.broadcast %3 : vector<1x256xf32> to vector<8x256xf32>
    %5 = arith.addf %2, %4 : vector<8x256xf32>
    %cst_5 = arith.constant 0.000000e+00 : f32
    %6 = vector.broadcast %cst_5 : f32 to vector<8x256xf32>
    %7 = arith.maximumf %5, %6 : vector<8x256xf32>
    %c0_6 = arith.constant 0 : index
    %c0_7 = arith.constant 0 : index
    %8 = vector.load %arg4[%c0_6, %c0_7] : memref<256x128xf32, #tpu.memory_space<vmem>>, vector<256x128xf32>
    %cst_8 = arith.constant dense<0.000000e+00> : vector<8x128xf32>
    %9 = tpu.matmul %7, %8, %cst_8 {dimension_numbers = #tpu.dot_dimension_numbers<[1], [0], [0], [1], [0, 0, 1, 1], [], []>} : vector<8x256xf32>, vector<256x128xf32>, vector<8x128xf32> -> vector<8x128xf32>
    %c0_9 = arith.constant 0 : index
    %c0_10 = arith.constant 0 : index
    %10 = vector.load %arg5[%c0_9, %c0_10] : memref<1x128xf32, #tpu.memory_space<vmem>>, vector<1x128xf32>
    %11 = vector.broadcast %10 : vector<1x128xf32> to vector<8x128xf32>
    %12 = arith.addf %9, %11 : vector<8x128xf32>
    %13 = arith.addf %0, %12 : vector<8x128xf32>
    %c0_11 = arith.constant 0 : index
    %c0_12 = arith.constant 0 : index
    %14 = vector.load %arg8[%c0_11, %c0_12] : memref<128x128xf32, #tpu.memory_space<vmem>>, vector<128x128xf32>
    %15 = arith.truncf %13 : vector<8x128xf32> to vector<8x128xbf16>
    %16 = arith.extf %15 : vector<8x128xbf16> to vector<8x128xf32>
    %17 = arith.subf %13, %16 : vector<8x128xf32>
    %cst_13 = arith.constant dense<0.000000e+00> : vector<8x128xf32>
    %18 = tpu.matmul %16, %14, %cst_13 {dimension_numbers = #tpu.dot_dimension_numbers<[1], [0], [0], [1], [0, 0, 1, 1], [], []>} : vector<8x128xf32>, vector<128x128xf32>, vector<8x128xf32> -> vector<8x128xf32>
    %cst_14 = arith.constant dense<0.000000e+00> : vector<8x128xf32>
    %19 = tpu.matmul %17, %14, %cst_14 {dimension_numbers = #tpu.dot_dimension_numbers<[1], [0], [0], [1], [0, 0, 1, 1], [], []>} : vector<8x128xf32>, vector<128x128xf32>, vector<8x128xf32> -> vector<8x128xf32>
    %20 = arith.addf %18, %19 : vector<8x128xf32>
    %21 = arith.subf %13, %20 : vector<8x128xf32>
    %22 = arith.mulf %21, %21 : vector<8x128xf32>
    %23 = arith.truncf %22 : vector<8x128xf32> to vector<8x128xbf16>
    %24 = arith.extf %23 : vector<8x128xbf16> to vector<8x128xf32>
    %25 = arith.subf %22, %24 : vector<8x128xf32>
    %cst_15 = arith.constant dense<0.000000e+00> : vector<8x128xf32>
    %26 = tpu.matmul %24, %14, %cst_15 {dimension_numbers = #tpu.dot_dimension_numbers<[1], [0], [0], [1], [0, 0, 1, 1], [], []>} : vector<8x128xf32>, vector<128x128xf32>, vector<8x128xf32> -> vector<8x128xf32>
    %cst_16 = arith.constant dense<0.000000e+00> : vector<8x128xf32>
    %27 = tpu.matmul %25, %14, %cst_16 {dimension_numbers = #tpu.dot_dimension_numbers<[1], [0], [0], [1], [0, 0, 1, 1], [], []>} : vector<8x128xf32>, vector<128x128xf32>, vector<8x128xf32> -> vector<8x128xf32>
    %28 = arith.addf %26, %27 : vector<8x128xf32>
    %cst_17 = arith.constant 9.99999974E-6 : f32
    %29 = vector.broadcast %cst_17 : f32 to vector<8x128xf32>
    %30 = arith.addf %28, %29 : vector<8x128xf32>
    %31 = math.rsqrt %30 : vector<8x128xf32>
    %32 = arith.mulf %21, %31 : vector<8x128xf32>
    %c0_18 = arith.constant 0 : index
    %c0_19 = arith.constant 0 : index
    %33 = vector.load %arg6[%c0_18, %c0_19] : memref<1x128xf32, #tpu.memory_space<vmem>>, vector<1x128xf32>
    %34 = vector.broadcast %33 : vector<1x128xf32> to vector<8x128xf32>
    %35 = arith.mulf %32, %34 : vector<8x128xf32>
    %c0_20 = arith.constant 0 : index
    %c0_21 = arith.constant 0 : index
    %36 = vector.load %arg7[%c0_20, %c0_21] : memref<1x128xf32, #tpu.memory_space<vmem>>, vector<1x128xf32>
    %37 = vector.broadcast %36 : vector<1x128xf32> to vector<8x128xf32>
    %38 = arith.addf %35, %37 : vector<8x128xf32>
    %c0_22 = arith.constant 0 : index
    %c0_23 = arith.constant 0 : index
    %39 = vector.load %arg9[%c0_22, %c0_23] : memref<8x128xf32, #tpu.memory_space<vmem>>, vector<8x128xf32>
    tpu.vector_store %arg9[%c0_22, %c0_23], %38 {strides = array<i32>} : memref<8x128xf32, #tpu.memory_space<vmem>>, vector<8x128xf32>,
    return
  }
  func.func @transform_0(%arg0: i32) -> (i32, i32) {
    %c0_i32 = arith.constant 0 : i32
    %c0_i32_0 = arith.constant 0 : i32
    return %arg0, %c0_i32 : i32, i32
  }
  func.func @transform_1(%arg0: i32) -> (i32, i32) {
    %c0_i32 = arith.constant 0 : i32
    %c0_i32_0 = arith.constant 0 : i32
    %c0_i32_1 = arith.constant 0 : i32
    return %c0_i32, %c0_i32_0 : i32, i32
  }
  func.func @transform_2(%arg0: i32) -> (i32, i32) {
    %c0_i32 = arith.constant 0 : i32
    %c0_i32_0 = arith.constant 0 : i32
    %c0_i32_1 = arith.constant 0 : i32
    return %c0_i32, %c0_i32_0 : i32, i32
  }
  func.func @transform_3(%arg0: i32) -> (i32, i32) {
    %c0_i32 = arith.constant 0 : i32
    %c0_i32_0 = arith.constant 0 : i32
    %c0_i32_1 = arith.constant 0 : i32
    return %c0_i32, %c0_i32_0 : i32, i32
  }
  func.func @transform_4(%arg0: i32) -> (i32, i32) {
    %c0_i32 = arith.constant 0 : i32
    %c0_i32_0 = arith.constant 0 : i32
    %c0_i32_1 = arith.constant 0 : i32
    return %c0_i32, %c0_i32_0 : i32, i32
  }
  func.func @transform_5(%arg0: i32) -> (i32, i32) {
    %c0_i32 = arith.constant 0 : i32
    %c0_i32_0 = arith.constant 0 : i32
    %c0_i32_1 = arith.constant 0 : i32
    return %c0_i32, %c0_i32_0 : i32, i32
  }
  func.func @transform_6(%arg0: i32) -> (i32, i32) {
    %c0_i32 = arith.constant 0 : i32
    %c0_i32_0 = arith.constant 0 : i32
    %c0_i32_1 = arith.constant 0 : i32
    return %c0_i32, %c0_i32_0 : i32, i32
  }
  func.func @transform_7(%arg0: i32) -> (i32, i32) {
    %c0_i32 = arith.constant 0 : i32
    %c0_i32_0 = arith.constant 0 : i32
    %c0_i32_1 = arith.constant 0 : i32
    return %c0_i32, %c0_i32_0 : i32, i32
  }
  func.func @transform_8(%arg0: i32) -> (i32, i32) {
    %c0_i32 = arith.constant 0 : i32
    %c0_i32_0 = arith.constant 0 : i32
    return %arg0, %c0_i32 : i32, i32
  }
}

</mosaic_0001>

<llo_original>
// kernel: tpu_custom_call.1
$region0: #{tpu_custom_call.1}
  #allocation0 [shape = 'u32[]', space=smem, size = 0x4, offset = 0x4, fixed_abs, tag = 'smem constant byte address 0x4 - core index']
  #allocation1 [shape = 'u32[144,128]{1,0:T(1,128)}', space=vmem, size = 0x12000, scoped, tag = 'internal scratch']
  %s0 = inlined_call_operand.hbm [shape: f32[8,128], index: 0, kind: input, shape index: {}]
  %s1 = inlined_call_operand.hbm [shape: f32[128,256], index: 1, kind: input, shape index: {}]
  %s2 = inlined_call_operand.vmem [shape: f32[1,256], index: 2, kind: input, shape index: {}]
  %s3 = inlined_call_operand.hbm [shape: f32[256,128], index: 3, kind: input, shape index: {}]
  %s4 = inlined_call_operand.vmem [shape: f32[1,128], index: 4, kind: input, shape index: {}]
  %s5 = inlined_call_operand.vmem [shape: f32[1,128], index: 5, kind: input, shape index: {}]
  %s6 = inlined_call_operand.vmem [shape: f32[1,128], index: 6, kind: input, shape index: {}]
  %s7 = inlined_call_operand.hbm [shape: f32[128,128], index: 7, kind: input, shape index: {}]
  %s8 = inlined_call_operand.hbm [shape: f32[8,128], index: 8, kind: output, shape index: {}]
  %s9 = sld [smem:[#allocation0]]
  $region58: #{tpu_custom_call.1} parent=0
    _
  %s11 = ssub.s32 1, %s9
  %s12 = scalar_select 0, %s11, %s9
  $region1: #{tpu_custom_call.1} parent=0
    #allocation2 [shape = 'u8[4096]{0}', space=vmem, size = 0x1000, scoped, tag = 'input window, operand 0, single buffered']
    #allocation3 [shape = 's32[1]{0}', space=sflag, size = 0x4, scoped, tag = 'scoped memory for tpu_custom_call.1']
    #allocation4 [shape = 's32[1]{0}', space=sflag, size = 0x4, scoped, tag = 'scoped memory for tpu_custom_call.1']
    #allocation5 [shape = 'u8[131072]{0}', space=vmem, size = 0x20000, scoped, tag = 'input window, operand 1, single buffered']
    #allocation6 [shape = 's32[1]{0}', space=sflag, size = 0x4, scoped, tag = 'scoped memory for tpu_custom_call.1']
    #allocation7 [shape = 'u8[131072]{0}', space=vmem, size = 0x20000, scoped, tag = 'input window, operand 3, single buffered']
    #allocation8 [shape = 'u8[65536]{0}', space=vmem, size = 0x10000, scoped, tag = 'input window, operand 7, single buffered']
    #allocation9 [shape = 's32[1]{0}', space=sflag, size = 0x4, scoped, tag = 'scoped memory for tpu_custom_call.1']
    #allocation10 [shape = 'u8[4096]{0}', space=vmem, size = 0x1000, scoped, tag = 'output window, operand 0, single buffered']
    %13 = vsyncpa [#allocation3], 0
    %14 = vsyncpa [#allocation6], 0
    %15 = vsyncpa [#allocation9], 0
    %16 = vsyncpa [#allocation4], 0
    // Predicated region
    $region2: #{tpu_custom_call.1} parent=1 // pred_check
      _
    $region3: #{tpu_custom_call.1} parent=1 // pred_check_branch
      %18 = sbr.rel (0) target = $region5
    $region4: #{tpu_custom_call.1} parent=1 // pred_region
      %s20 = ssub.s32 128, 128
      %21 = vsyncadd [#allocation3], %s20
      %s23 = sshll.u32 [#allocation2], 4
      %s24 = int_to_ptr.vmem [resolvable:$true] %s23
      %26 = dma.hbm_to_vmem [thread:$0]  %s0, 128, %s24, [#allocation3]
    $region5: #{tpu_custom_call.1} parent=1 // pred_fallthru
      _
    // Predicated region
    $region6: #{tpu_custom_call.1} parent=1 // pred_check
      _
    $region7: #{tpu_custom_call.1} parent=1 // pred_check_branch
      %28 = sbr.rel (0) target = $region9
    $region8: #{tpu_custom_call.1} parent=1 // pred_region
      %s30 = ssub.s32 4096, 4096
      %31 = vsyncadd [#allocation6], %s30
      %s32 = sshll.u32 [#allocation5], 4
      %s33 = int_to_ptr.vmem [resolvable:$true] %s32
      %38 = dma.hbm_to_vmem [thread:$0]  %s1, 4096, %s33, [#allocation6], 256, 256, 16
    $region9: #{tpu_custom_call.1} parent=1 // pred_fallthru
      _
    // Predicated region
    $region10: #{tpu_custom_call.1} parent=1 // pred_check
      _
    $region11: #{tpu_custom_call.1} parent=1 // pred_check_branch
      %40 = sbr.rel (0) target = $region13
    $region12: #{tpu_custom_call.1} parent=1 // pred_region
      _
    $region13: #{tpu_custom_call.1} parent=1 // pred_fallthru
      _
    // Predicated region
    $region14: #{tpu_custom_call.1} parent=1 // pred_check
      _
    $region15: #{tpu_custom_call.1} parent=1 // pred_check_branch
      %42 = sbr.rel (0) target = $region17
    $region16: #{tpu_custom_call.1} parent=1 // pred_region
      %s44 = ssub.s32 4096, 4096
      %45 = vsyncadd [#allocation6], %s44
      %s46 = sshll.u32 [#allocation7], 4
      %s47 = int_to_ptr.vmem [resolvable:$true] %s46
      %52 = dma.hbm_to_vmem [thread:$0]  %s3, 4096, %s47, [#allocation6], 128, 128, 8
    $region17: #{tpu_custom_call.1} parent=1 // pred_fallthru
      _
    // Predicated region
    $region18: #{tpu_custom_call.1} parent=1 // pred_check
      _
    $region19: #{tpu_custom_call.1} parent=1 // pred_check_branch
      %54 = sbr.rel (0) target = $region21
    $region20: #{tpu_custom_call.1} parent=1 // pred_region
      _
    $region21: #{tpu_custom_call.1} parent=1 // pred_fallthru
      _
    // Predicated region
    $region22: #{tpu_custom_call.1} parent=1 // pred_check
      _
    $region23: #{tpu_custom_call.1} parent=1 // pred_check_branch
      %56 = sbr.rel (0) target = $region25
    $region24: #{tpu_custom_call.1} parent=1 // pred_region
      _
    $region25: #{tpu_custom_call.1} parent=1 // pred_fallthru
      _
    // Predicated region
    $region26: #{tpu_custom_call.1} parent=1 // pred_check
      _
    $region27: #{tpu_custom_call.1} parent=1 // pred_check_branch
      %58 = sbr.rel (0) target = $region29
    $region28: #{tpu_custom_call.1} parent=1 // pred_region
      _
    $region29: #{tpu_custom_call.1} parent=1 // pred_fallthru
      _
    // Predicated region
    $region30: #{tpu_custom_call.1} parent=1 // pred_check
      _
    $region31: #{tpu_custom_call.1} parent=1 // pred_check_branch
      %60 = sbr.rel (0) target = $region33
    $region32: #{tpu_custom_call.1} parent=1 // pred_region
      %s62 = ssub.s32 2048, 2048
      %63 = vsyncadd [#allocation9], %s62
      %s64 = sshll.u32 [#allocation8], 4
      %s65 = int_to_ptr.vmem [resolvable:$true] %s64
      %70 = dma.hbm_to_vmem [thread:$0]  %s7, 2048, %s65, [#allocation9], 128, 128, 8
    $region33: #{tpu_custom_call.1} parent=1 // pred_fallthru
      _
    // Predicated region
    $region34: #{tpu_custom_call.1} parent=1 // pred_check
      _
    $region35: #{tpu_custom_call.1} parent=1 // pred_check_branch
      %72 = sbr.rel (0) target = $region37
    $region36: #{tpu_custom_call.1} parent=1 // pred_region
      %73 = dma.done [#allocation3], 128
    $region37: #{tpu_custom_call.1} parent=1 // pred_fallthru
      _
    // Predicated region
    $region38: #{tpu_custom_call.1} parent=1 // pred_check
      _
    $region39: #{tpu_custom_call.1} parent=1 // pred_check_branch
      %75 = sbr.rel (0) target = $region41
    $region40: #{tpu_custom_call.1} parent=1 // pred_region
      %76 = dma.done [#allocation6], 4096
    $region41: #{tpu_custom_call.1} parent=1 // pred_fallthru
      _
    // Predicated region
    $region42: #{tpu_custom_call.1} parent=1 // pred_check
      _
    $region43: #{tpu_custom_call.1} parent=1 // pred_check_branch
      %78 = sbr.rel (0) target = $region45
    $region44: #{tpu_custom_call.1} parent=1 // pred_region
      %79 = dma.done [#allocation6], 4096
    $region45: #{tpu_custom_call.1} parent=1 // pred_fallthru
      _
    // Predicated region
    $region46: #{tpu_custom_call.1} parent=1 // pred_check
      _
    $region47: #{tpu_custom_call.1} parent=1 // pred_check_branch
      %81 = sbr.rel (0) target = $region49
    $region48: #{tpu_custom_call.1} parent=1 // pred_region
      %82 = dma.done [#allocation9], 2048
    $region49: #{tpu_custom_call.1} parent=1 // pred_fallthru
      _
    %v83 = vld [vmem:[#allocation2] sm:$0xff]
    %v84 = vld [vmem:[#allocation5] sm:$0xff]
    %v85 = vld [vmem:[#allocation5 + $0x8] sm:$0xff]
    %v86 = vld [vmem:[#allocation5 + $0x10] sm:$0xff]
    %v87 = vld [vmem:[#allocation5 + $0x18] sm:$0xff]
    %v88 = vld [vmem:[#allocation5 + $0x20] sm:$0xff]
    %v89 = vld [vmem:[#allocation5 + $0x28] sm:$0xff]
    %v90 = vld [vmem:[#allocation5 + $0x30] sm:$0xff]
    %v91 = vld [vmem:[#allocation5 + $0x38] sm:$0xff]
    %v92 = vld [vmem:[#allocation5 + $0x40] sm:$0xff]
    %v93 = vld [vmem:[#allocation5 + $0x48] sm:$0xff]
    %v94 = vld [vmem:[#allocation5 + $0x50] sm:$0xff]
    %v95 = vld [vmem:[#allocation5 + $0x58] sm:$0xff]
    %v96 = vld [vmem:[#allocation5 + $0x60] sm:$0xff]
    %v97 = vld [vmem:[#allocation5 + $0x68] sm:$0xff]
    %v98 = vld [vmem:[#allocation5 + $0x70] sm:$0xff]
    %v99 = vld [vmem:[#allocation5 + $0x78] sm:$0xff]
    %v100 = vld [vmem:[#allocation5 + $0x80] sm:$0xff]
    %v101 = vld [vmem:[#allocation5 + $0x88] sm:$0xff]
    %v102 = vld [vmem:[#allocation5 + $0x90] sm:$0xff]
    %v103 = vld [vmem:[#allocation5 + $0x98] sm:$0xff]
    %v104 = vld [vmem:[#allocation5 + $0xa0] sm:$0xff]
    %v105 = vld [vmem:[#allocation5 + $0xa8] sm:$0xff]
    %v106 = vld [vmem:[#allocation5 + $0xb0] sm:$0xff]
    %v107 = vld [vmem:[#allocation5 + $0xb8] sm:$0xff]
    %v108 = vld [vmem:[#allocation5 + $0xc0] sm:$0xff]
    %v109 = vld [vmem:[#allocation5 + $0xc8] sm:$0xff]
    %v110 = vld [vmem:[#allocation5 + $0xd0] sm:$0xff]
    %v111 = vld [vmem:[#allocation5 + $0xd8] sm:$0xff]
    %v112 = vld [vmem:[#allocation5 + $0xe0] sm:$0xff]
    %v113 = vld [vmem:[#allocation5 + $0xe8] sm:$0xff]
    %v114 = vld [vmem:[#allocation5 + $0xf0] sm:$0xff]
    %v115 = vld [vmem:[#allocation5 + $0xf8] sm:$0xff]
    %v116 = vld [vmem:[%s2] sm:$0x3]
    %v118 = vlaneseq
    %v119 = vshrl.u32 %v118, 7
    %v120 = vsub.s32 0, %v119
    %v121 = vrot.slane %v116, %v120
    %v122 = vlaneseq
    %v123 = vshrl.u32 %v122, 7
    %v124 = vsub.s32 1, %v123
    %v125 = vrot.slane %v116, %v124
    %128 = vmatprep.subr.mxu0 %v85
    %129 = vmatpush1.msra.mxu0 %v84
    %130 = vmatprep.subr.mxu0 %v87
    %131 = vmatpush1.msra.mxu0 %v86
    %132 = vmatprep.subr.mxu0 %v89
    %133 = vmatpush1.msra.mxu0 %v88
    %134 = vmatprep.subr.mxu0 %v91
    %135 = vmatpush1.msra.mxu0 %v90
    %136 = vmatprep.subr.mxu0 %v93
    %137 = vmatpush1.msra.mxu0 %v92
    %138 = vmatprep.subr.mxu0 %v95
    %139 = vmatpush1.msra.mxu0 %v94
    %140 = vmatprep.subr.mxu0 %v97
    %141 = vmatpush1.msra.mxu0 %v96
    %142 = vmatprep.subr.mxu0 %v99
    %143 = vmatpush1.msra.mxu0 %v98
    %144 = vmatprep.subr.mxu0 %v101
    %145 = vmatpush1.msra.mxu0 %v100
    %146 = vmatprep.subr.mxu0 %v103
    %147 = vmatpush1.msra.mxu0 %v102
    %148 = vmatprep.subr.mxu0 %v105
    %149 = vmatpush1.msra.mxu0 %v104
    %150 = vmatprep.subr.mxu0 %v107
    %151 = vmatpush1.msra.mxu0 %v106
    %152 = vmatprep.subr.mxu0 %v109
    %153 = vmatpush1.msra.mxu0 %v108
    %154 = vmatprep.subr.mxu0 %v111
    %155 = vmatpush1.msra.mxu0 %v110
    %156 = vmatprep.subr.mxu0 %v113
    %157 = vmatpush1.msra.mxu0 %v112
    %158 = vmatprep.subr.mxu0 %v115
    %159 = vmatpush1.msra.mxu0 %v114
    %160 = vmatprep.subr.mxu0 0.0
    %161 = vmatpush1.msra.mxu0 0.0
    %162 = vmatprep.subr.mxu0 0.0
    %163 = vmatpush1.msra.mxu0 0.0
    %164 = vmatprep.subr.mxu0 0.0
    %165 = vmatpush1.msra.mxu0 0.0
    %166 = vmatprep.subr.mxu0 0.0
    %167 = vmatpush1.msra.mxu0 0.0
    %168 = vmatprep.subr.mxu0 0.0
    %169 = vmatpush1.msra.mxu0 0.0
    %170 = vmatprep.subr.mxu0 0.0
    %171 = vmatpush1.msra.mxu0 0.0
    %172 = vmatprep.subr.mxu0 0.0
    %173 = vmatpush1.msra.mxu0 0.0
    %174 = vmatprep.subr.mxu0 0.0
    %175 = vmatpush1.msra.mxu0 0.0
    %176 = vmatprep.subr.mxu0 0.0
    %177 = vmatpush1.msra.mxu0 0.0
    %178 = vmatprep.subr.mxu0 0.0
    %179 = vmatpush1.msra.mxu0 0.0
    %180 = vmatprep.subr.mxu0 0.0
    %181 = vmatpush1.msra.mxu0 0.0
    %182 = vmatprep.subr.mxu0 0.0
    %183 = vmatpush1.msra.mxu0 0.0
    %184 = vmatprep.subr.mxu0 0.0
    %185 = vmatpush1.msra.mxu0 0.0
    %186 = vmatprep.subr.mxu0 0.0
    %187 = vmatpush1.msra.mxu0 0.0
    %188 = vmatprep.subr.mxu0 0.0
    %189 = vmatpush1.msra.mxu0 0.0
    %190 = vmatprep.subr.mxu0 0.0
    %191 = vmatpush1.msra.mxu0 0.0
    %192 = vmatprep.mubr.f32.mxu0 0.0
    %193 = vmatmul.mubr.f32.gmra.mrb[0].mxu0 %v83
    %v194 = vpop.f32.mrb[0].mxu0
    %v195 = vadd.f32 %v121, %v194
    %v196 = vpop.f32.mrb[0].mxu0
    %v197 = vadd.f32 %v125, %v196
    %198 = vdwg.mxu0
    %v199 = vmax.f32 %v195, 0.0
    %v200 = vmax.f32 %v197, 0.0
    %v201 = vld [vmem:[#allocation7] sm:$0xff]
    %v202 = vld [vmem:[#allocation7 + $0x8] sm:$0xff]
    %v203 = vld [vmem:[#allocation7 + $0x10] sm:$0xff]
    %v204 = vld [vmem:[#allocation7 + $0x18] sm:$0xff]
    %v205 = vld [vmem:[#allocation7 + $0x20] sm:$0xff]
    %v206 = vld [vmem:[#allocation7 + $0x28] sm:$0xff]
    %v207 = vld [vmem:[#allocation7 + $0x30] sm:$0xff]
    %v208 = vld [vmem:[#allocation7 + $0x38] sm:$0xff]
    %v209 = vld [vmem:[#allocation7 + $0x40] sm:$0xff]
    %v210 = vld [vmem:[#allocation7 + $0x48] sm:$0xff]
    %v211 = vld [vmem:[#allocation7 + $0x50] sm:$0xff]
    %v212 = vld [vmem:[#allocation7 + $0x58] sm:$0xff]
    %v213 = vld [vmem:[#allocation7 + $0x60] sm:$0xff]
    %v214 = vld [vmem:[#allocation7 + $0x68] sm:$0xff]
    %v215 = vld [vmem:[#allocation7 + $0x70] sm:$0xff]
    %v216 = vld [vmem:[#allocation7 + $0x78] sm:$0xff]
    %v217 = vld [vmem:[#allocation7 + $0x80] sm:$0xff]
    %v218 = vld [vmem:[#allocation7 + $0x88] sm:$0xff]
    %v219 = vld [vmem:[#allocation7 + $0x90] sm:$0xff]
    %v220 = vld [vmem:[#allocation7 + $0x98] sm:$0xff]
    %v221 = vld [vmem:[#allocation7 + $0xa0] sm:$0xff]
    %v222 = vld [vmem:[#allocation7 + $0xa8] sm:$0xff]
    %v223 = vld [vmem:[#allocation7 + $0xb0] sm:$0xff]
    %v224 = vld [vmem:[#allocation7 + $0xb8] sm:$0xff]
    %v225 = vld [vmem:[#allocation7 + $0xc0] sm:$0xff]
    %v226 = vld [vmem:[#allocation7 + $0xc8] sm:$0xff]
    %v227 = vld [vmem:[#allocation7 + $0xd0] sm:$0xff]
    %v228 = vld [vmem:[#allocation7 + $0xd8] sm:$0xff]
    %v229 = vld [vmem:[#allocation7 + $0xe0] sm:$0xff]
    %v230 = vld [vmem:[#allocation7 + $0xe8] sm:$0xff]
    %v231 = vld [vmem:[#allocation7 + $0xf0] sm:$0xff]
    %v232 = vld [vmem:[#allocation7 + $0xf8] sm:$0xff]
    %v233 = vld [vmem:[%s4] sm:$0x1]
    %v235 = vlaneseq
    %v236 = vshrl.u32 %v235, 7
    %v237 = vsub.s32 0, %v236
    %v238 = vrot.slane %v233, %v237
    %240 = vmatprep.subr.mxu0 0.0
    %241 = vmatpush1.msra.mxu0 %v201
    %242 = vmatprep.subr.mxu0 0.0
    %243 = vmatpush1.msra.mxu0 %v202
    %244 = vmatprep.subr.mxu0 0.0
    %245 = vmatpush1.msra.mxu0 %v203
    %246 = vmatprep.subr.mxu0 0.0
    %247 = vmatpush1.msra.mxu0 %v204
    %248 = vmatprep.subr.mxu0 0.0
    %249 = vmatpush1.msra.mxu0 %v205
    %250 = vmatprep.subr.mxu0 0.0
    %251 = vmatpush1.msra.mxu0 %v206
    %252 = vmatprep.subr.mxu0 0.0
    %253 = vmatpush1.msra.mxu0 %v207
    %254 = vmatprep.subr.mxu0 0.0
    %255 = vmatpush1.msra.mxu0 %v208
    %256 = vmatprep.subr.mxu0 0.0
    %257 = vmatpush1.msra.mxu0 %v209
    %258 = vmatprep.subr.mxu0 0.0
    %259 = vmatpush1.msra.mxu0 %v210
    %260 = vmatprep.subr.mxu0 0.0
    %261 = vmatpush1.msra.mxu0 %v211
    %262 = vmatprep.subr.mxu0 0.0
    %263 = vmatpush1.msra.mxu0 %v212
    %264 = vmatprep.subr.mxu0 0.0
    %265 = vmatpush1.msra.mxu0 %v213
    %266 = vmatprep.subr.mxu0 0.0
    %267 = vmatpush1.msra.mxu0 %v214
    %268 = vmatprep.subr.mxu0 0.0
    %269 = vmatpush1.msra.mxu0 %v215
    %270 = vmatprep.subr.mxu0 0.0
    %271 = vmatpush1.msra.mxu0 %v216
    %272 = vmatprep.subr.mxu0 0.0
    %273 = vmatpush1.msra.mxu0 %v217
    %274 = vmatprep.subr.mxu0 0.0
    %275 = vmatpush1.msra.mxu0 %v218
    %276 = vmatprep.subr.mxu0 0.0
    %277 = vmatpush1.msra.mxu0 %v219
    %278 = vmatprep.subr.mxu0 0.0
    %279 = vmatpush1.msra.mxu0 %v220
    %280 = vmatprep.subr.mxu0 0.0
    %281 = vmatpush1.msra.mxu0 %v221
    %282 = vmatprep.subr.mxu0 0.0
    %283 = vmatpush1.msra.mxu0 %v222
    %284 = vmatprep.subr.mxu0 0.0
    %285 = vmatpush1.msra.mxu0 %v223
    %286 = vmatprep.subr.mxu0 0.0
    %287 = vmatpush1.msra.mxu0 %v224
    %288 = vmatprep.subr.mxu0 0.0
    %289 = vmatpush1.msra.mxu0 %v225
    %290 = vmatprep.subr.mxu0 0.0
    %291 = vmatpush1.msra.mxu0 %v226
    %292 = vmatprep.subr.mxu0 0.0
    %293 = vmatpush1.msra.mxu0 %v227
    %294 = vmatprep.subr.mxu0 0.0
    %295 = vmatpush1.msra.mxu0 %v228
    %296 = vmatprep.subr.mxu0 0.0
    %297 = vmatpush1.msra.mxu0 %v229
    %298 = vmatprep.subr.mxu0 0.0
    %299 = vmatpush1.msra.mxu0 %v230
    %300 = vmatprep.subr.mxu0 0.0
    %301 = vmatpush1.msra.mxu0 %v231
    %302 = vmatprep.subr.mxu0 0.0
    %303 = vmatpush1.msra.mxu0 %v232
    %304 = vmatprep.mubr.f32.mxu0 %v200
    %305 = vmatmul.mubr.f32.gmra.mrb[0].mxu0 %v199
    %v306 = vpop.f32.mrb[0].mxu0
    %v307 = vadd.f32 %v238, %v306
    %v308 = vpop.f32.mrb[0].mxu0
    %309 = vdwg.mxu0
    %v310 = vadd.f32 %v83, %v307
    %v311 = vld [vmem:[#allocation8] sm:$0xff]
    %v312 = vld [vmem:[#allocation8 + $0x8] sm:$0xff]
    %v313 = vld [vmem:[#allocation8 + $0x10] sm:$0xff]
    %v314 = vld [vmem:[#allocation8 + $0x18] sm:$0xff]
    %v315 = vld [vmem:[#allocation8 + $0x20] sm:$0xff]
    %v316 = vld [vmem:[#allocation8 + $0x28] sm:$0xff]
    %v317 = vld [vmem:[#allocation8 + $0x30] sm:$0xff]
    %v318 = vld [vmem:[#allocation8 + $0x38] sm:$0xff]
    %v319 = vld [vmem:[#allocation8 + $0x40] sm:$0xff]
    %v320 = vld [vmem:[#allocation8 + $0x48] sm:$0xff]
    %v321 = vld [vmem:[#allocation8 + $0x50] sm:$0xff]
    %v322 = vld [vmem:[#allocation8 + $0x58] sm:$0xff]
    %v323 = vld [vmem:[#allocation8 + $0x60] sm:$0xff]
    %v324 = vld [vmem:[#allocation8 + $0x68] sm:$0xff]
    %v325 = vld [vmem:[#allocation8 + $0x70] sm:$0xff]
    %v326 = vld [vmem:[#allocation8 + $0x78] sm:$0xff]
    %v327 = vpack.c.bf16 %v310, %v310
    %v328 = vunpack.c.l.bf16 %v327
    %v329 = vsub.f32 %v310, %v328
    %330 = vmatprep.subr.mxu0 0.0
    %331 = vmatpush1.msra.mxu0 %v311
    %332 = vmatprep.subr.mxu0 0.0
    %333 = vmatpush1.msra.mxu0 %v312
    %334 = vmatprep.subr.mxu0 0.0
    %335 = vmatpush1.msra.mxu0 %v313
    %336 = vmatprep.subr.mxu0 0.0
    %337 = vmatpush1.msra.mxu0 %v314
    %338 = vmatprep.subr.mxu0 0.0
    %339 = vmatpush1.msra.mxu0 %v315
    %340 = vmatprep.subr.mxu0 0.0
    %341 = vmatpush1.msra.mxu0 %v316
    %342 = vmatprep.subr.mxu0 0.0
    %343 = vmatpush1.msra.mxu0 %v317
    %344 = vmatprep.subr.mxu0 0.0
    %345 = vmatpush1.msra.mxu0 %v318
    %346 = vmatprep.subr.mxu0 0.0
    %347 = vmatpush1.msra.mxu0 %v319
    %348 = vmatprep.subr.mxu0 0.0
    %349 = vmatpush1.msra.mxu0 %v320
    %350 = vmatprep.subr.mxu0 0.0
    %351 = vmatpush1.msra.mxu0 %v321
    %352 = vmatprep.subr.mxu0 0.0
    %353 = vmatpush1.msra.mxu0 %v322
    %354 = vmatprep.subr.mxu0 0.0
    %355 = vmatpush1.msra.mxu0 %v323
    %356 = vmatprep.subr.mxu0 0.0
    %357 = vmatpush1.msra.mxu0 %v324
    %358 = vmatprep.subr.mxu0 0.0
    %359 = vmatpush1.msra.mxu0 %v325
    %360 = vmatprep.subr.mxu0 0.0
    %361 = vmatpush1.msra.mxu0 %v326
    %362 = vmatprep.subr.mxu0 0.0
    %363 = vmatpush1.msra.mxu0 0.0
    %364 = vmatprep.subr.mxu0 0.0
    %365 = vmatpush1.msra.mxu0 0.0
    %366 = vmatprep.subr.mxu0 0.0
    %367 = vmatpush1.msra.mxu0 0.0
    %368 = vmatprep.subr.mxu0 0.0
    %369 = vmatpush1.msra.mxu0 0.0
    %370 = vmatprep.subr.mxu0 0.0
    %371 = vmatpush1.msra.mxu0 0.0
    %372 = vmatprep.subr.mxu0 0.0
    %373 = vmatpush1.msra.mxu0 0.0
    %374 = vmatprep.subr.mxu0 0.0
    %375 = vmatpush1.msra.mxu0 0.0
    %376 = vmatprep.subr.mxu0 0.0
    %377 = vmatpush1.msra.mxu0 0.0
    %378 = vmatprep.subr.mxu0 0.0
    %379 = vmatpush1.msra.mxu0 0.0
    %380 = vmatprep.subr.mxu0 0.0
    %381 = vmatpush1.msra.mxu0 0.0
    %382 = vmatprep.subr.mxu0 0.0
    %383 = vmatpush1.msra.mxu0 0.0
    %384 = vmatprep.subr.mxu0 0.0
    %385 = vmatpush1.msra.mxu0 0.0
    %386 = vmatprep.subr.mxu0 0.0
    %387 = vmatpush1.msra.mxu0 0.0
    %388 = vmatprep.subr.mxu0 0.0
    %389 = vmatpush1.msra.mxu0 0.0
    %390 = vmatprep.subr.mxu0 0.0
    %391 = vmatpush1.msra.mxu0 0.0
    %392 = vmatprep.subr.mxu0 0.0
    %393 = vmatpush1.msra.mxu0 0.0
    %394 = vmatprep.mubr.f32.mxu0 0.0
    %395 = vmatmul.mubr.f32.gmra.mrb[0].mxu0 %v329
    %v396 = vpop.f32.mrb[0].mxu0
    %v397 = vadd.f32 0.0, %v396
    %v398 = vpop.f32.mrb[0].mxu0
    %399 = vdwg.mxu0
    %400 = vmatprep.subr.mxu0 0.0
    %401 = vmatpush1.msra.mxu0 %v311
    %402 = vmatprep.subr.mxu0 0.0
    %403 = vmatpush1.msra.mxu0 %v312
    %404 = vmatprep.subr.mxu0 0.0
    %405 = vmatpush1.msra.mxu0 %v313
    %406 = vmatprep.subr.mxu0 0.0
    %407 = vmatpush1.msra.mxu0 %v314
    %408 = vmatprep.subr.mxu0 0.0
    %409 = vmatpush1.msra.mxu0 %v315
    %410 = vmatprep.subr.mxu0 0.0
    %411 = vmatpush1.msra.mxu0 %v316
    %412 = vmatprep.subr.mxu0 0.0
    %413 = vmatpush1.msra.mxu0 %v317
    %414 = vmatprep.subr.mxu0 0.0
    %415 = vmatpush1.msra.mxu0 %v318
    %416 = vmatprep.subr.mxu0 0.0
    %417 = vmatpush1.msra.mxu0 %v319
    %418 = vmatprep.subr.mxu0 0.0
    %419 = vmatpush1.msra.mxu0 %v320
    %420 = vmatprep.subr.mxu0 0.0
    %421 = vmatpush1.msra.mxu0 %v321
    %422 = vmatprep.subr.mxu0 0.0
    %423 = vmatpush1.msra.mxu0 %v322
    %424 = vmatprep.subr.mxu0 0.0
    %425 = vmatpush1.msra.mxu0 %v323
    %426 = vmatprep.subr.mxu0 0.0
    %427 = vmatpush1.msra.mxu0 %v324
    %428 = vmatprep.subr.mxu0 0.0
    %429 = vmatpush1.msra.mxu0 %v325
    %430 = vmatprep.subr.mxu0 0.0
    %431 = vmatpush1.msra.mxu0 %v326
    %432 = vmatprep.subr.mxu0 0.0
    %433 = vmatpush1.msra.mxu0 0.0
    %434 = vmatprep.subr.mxu0 0.0
    %435 = vmatpush1.msra.mxu0 0.0
    %436 = vmatprep.subr.mxu0 0.0
    %437 = vmatpush1.msra.mxu0 0.0
    %438 = vmatprep.subr.mxu0 0.0
    %439 = vmatpush1.msra.mxu0 0.0
    %440 = vmatprep.subr.mxu0 0.0
    %441 = vmatpush1.msra.mxu0 0.0
    %442 = vmatprep.subr.mxu0 0.0
    %443 = vmatpush1.msra.mxu0 0.0
    %444 = vmatprep.subr.mxu0 0.0
    %445 = vmatpush1.msra.mxu0 0.0
    %446 = vmatprep.subr.mxu0 0.0
    %447 = vmatpush1.msra.mxu0 0.0
    %448 = vmatprep.subr.mxu0 0.0
    %449 = vmatpush1.msra.mxu0 0.0
    %450 = vmatprep.subr.mxu0 0.0
    %451 = vmatpush1.msra.mxu0 0.0
    %452 = vmatprep.subr.mxu0 0.0
    %453 = vmatpush1.msra.mxu0 0.0
    %454 = vmatprep.subr.mxu0 0.0
    %455 = vmatpush1.msra.mxu0 0.0
    %456 = vmatprep.subr.mxu0 0.0
    %457 = vmatpush1.msra.mxu0 0.0
    %458 = vmatprep.subr.mxu0 0.0
    %459 = vmatpush1.msra.mxu0 0.0
    %460 = vmatprep.subr.mxu0 0.0
    %461 = vmatpush1.msra.mxu0 0.0
    %462 = vmatprep.subr.mxu0 0.0
    %463 = vmatpush1.msra.mxu0 0.0
    %464 = vmatprep.mubr.f32.mxu0 0.0
    %465 = vmatmul.mubr.f32.gmra.mrb[0].mxu0 %v328
    %v466 = vpop.f32.mrb[0].mxu0
    %v467 = vadd.f32 %v397, %v466
    %v468 = vpop.f32.mrb[0].mxu0
    %469 = vdwg.mxu0
    %v470 = vsub.f32 %v310, %v467
    %v471 = vmul.f32 %v470, %v470
    %v472 = vpack.c.bf16 %v471, %v471
    %v473 = vunpack.c.l.bf16 %v472
    %v474 = vsub.f32 %v471, %v473
    %475 = vmatprep.subr.mxu0 0.0
    %476 = vmatpush1.msra.mxu0 %v311
    %477 = vmatprep.subr.mxu0 0.0
    %478 = vmatpush1.msra.mxu0 %v312
    %479 = vmatprep.subr.mxu0 0.0
    %480 = vmatpush1.msra.mxu0 %v313
    %481 = vmatprep.subr.mxu0 0.0
    %482 = vmatpush1.msra.mxu0 %v314
    %483 = vmatprep.subr.mxu0 0.0
    %484 = vmatpush1.msra.mxu0 %v315
    %485 = vmatprep.subr.mxu0 0.0
    %486 = vmatpush1.msra.mxu0 %v316
    %487 = vmatprep.subr.mxu0 0.0
    %488 = vmatpush1.msra.mxu0 %v317
    %489 = vmatprep.subr.mxu0 0.0
    %490 = vmatpush1.msra.mxu0 %v318
    %491 = vmatprep.subr.mxu0 0.0
    %492 = vmatpush1.msra.mxu0 %v319
    %493 = vmatprep.subr.mxu0 0.0
    %494 = vmatpush1.msra.mxu0 %v320
    %495 = vmatprep.subr.mxu0 0.0
    %496 = vmatpush1.msra.mxu0 %v321
    %497 = vmatprep.subr.mxu0 0.0
    %498 = vmatpush1.msra.mxu0 %v322
    %499 = vmatprep.subr.mxu0 0.0
    %500 = vmatpush1.msra.mxu0 %v323
    %501 = vmatprep.subr.mxu0 0.0
    %502 = vmatpush1.msra.mxu0 %v324
    %503 = vmatprep.subr.mxu0 0.0
    %504 = vmatpush1.msra.mxu0 %v325
    %505 = vmatprep.subr.mxu0 0.0
    %506 = vmatpush1.msra.mxu0 %v326
    %507 = vmatprep.subr.mxu0 0.0
    %508 = vmatpush1.msra.mxu0 0.0
    %509 = vmatprep.subr.mxu0 0.0
    %510 = vmatpush1.msra.mxu0 0.0
    %511 = vmatprep.subr.mxu0 0.0
    %512 = vmatpush1.msra.mxu0 0.0
    %513 = vmatprep.subr.mxu0 0.0
    %514 = vmatpush1.msra.mxu0 0.0
    %515 = vmatprep.subr.mxu0 0.0
    %516 = vmatpush1.msra.mxu0 0.0
    %517 = vmatprep.subr.mxu0 0.0
    %518 = vmatpush1.msra.mxu0 0.0
    %519 = vmatprep.subr.mxu0 0.0
    %520 = vmatpush1.msra.mxu0 0.0
    %521 = vmatprep.subr.mxu0 0.0
    %522 = vmatpush1.msra.mxu0 0.0
    %523 = vmatprep.subr.mxu0 0.0
    %524 = vmatpush1.msra.mxu0 0.0
    %525 = vmatprep.subr.mxu0 0.0
    %526 = vmatpush1.msra.mxu0 0.0
    %527 = vmatprep.subr.mxu0 0.0
    %528 = vmatpush1.msra.mxu0 0.0
    %529 = vmatprep.subr.mxu0 0.0
    %530 = vmatpush1.msra.mxu0 0.0
    %531 = vmatprep.subr.mxu0 0.0
    %532 = vmatpush1.msra.mxu0 0.0
    %533 = vmatprep.subr.mxu0 0.0
    %534 = vmatpush1.msra.mxu0 0.0
    %535 = vmatprep.subr.mxu0 0.0
    %536 = vmatpush1.msra.mxu0 0.0
    %537 = vmatprep.subr.mxu0 0.0
    %538 = vmatpush1.msra.mxu0 0.0
    %539 = vmatprep.mubr.f32.mxu0 0.0
    %540 = vmatmul.mubr.f32.gmra.mrb[0].mxu0 %v474
    %v541 = vpop.f32.mrb[0].mxu0
    %v542 = vadd.f32 0.0, %v541
    %v543 = vpop.f32.mrb[0].mxu0
    %544 = vdwg.mxu0
    %545 = vmatprep.subr.mxu0 0.0
    %546 = vmatpush1.msra.mxu0 %v311
    %547 = vmatprep.subr.mxu0 0.0
    %548 = vmatpush1.msra.mxu0 %v312
    %549 = vmatprep.subr.mxu0 0.0
    %550 = vmatpush1.msra.mxu0 %v313
    %551 = vmatprep.subr.mxu0 0.0
    %552 = vmatpush1.msra.mxu0 %v314
    %553 = vmatprep.subr.mxu0 0.0
    %554 = vmatpush1.msra.mxu0 %v315
    %555 = vmatprep.subr.mxu0 0.0
    %556 = vmatpush1.msra.mxu0 %v316
    %557 = vmatprep.subr.mxu0 0.0
    %558 = vmatpush1.msra.mxu0 %v317
    %559 = vmatprep.subr.mxu0 0.0
    %560 = vmatpush1.msra.mxu0 %v318
    %561 = vmatprep.subr.mxu0 0.0
    %562 = vmatpush1.msra.mxu0 %v319
    %563 = vmatprep.subr.mxu0 0.0
    %564 = vmatpush1.msra.mxu0 %v320
    %565 = vmatprep.subr.mxu0 0.0
    %566 = vmatpush1.msra.mxu0 %v321
    %567 = vmatprep.subr.mxu0 0.0
    %568 = vmatpush1.msra.mxu0 %v322
    %569 = vmatprep.subr.mxu0 0.0
    %570 = vmatpush1.msra.mxu0 %v323
    %571 = vmatprep.subr.mxu0 0.0
    %572 = vmatpush1.msra.mxu0 %v324
    %573 = vmatprep.subr.mxu0 0.0
    %574 = vmatpush1.msra.mxu0 %v325
    %575 = vmatprep.subr.mxu0 0.0
    %576 = vmatpush1.msra.mxu0 %v326
    %577 = vmatprep.subr.mxu0 0.0
    %578 = vmatpush1.msra.mxu0 0.0
    %579 = vmatprep.subr.mxu0 0.0
    %580 = vmatpush1.msra.mxu0 0.0
    %581 = vmatprep.subr.mxu0 0.0
    %582 = vmatpush1.msra.mxu0 0.0
    %583 = vmatprep.subr.mxu0 0.0
    %584 = vmatpush1.msra.mxu0 0.0
    %585 = vmatprep.subr.mxu0 0.0
    %586 = vmatpush1.msra.mxu0 0.0
    %587 = vmatprep.subr.mxu0 0.0
    %588 = vmatpush1.msra.mxu0 0.0
    %589 = vmatprep.subr.mxu0 0.0
    %590 = vmatpush1.msra.mxu0 0.0
    %591 = vmatprep.subr.mxu0 0.0
    %592 = vmatpush1.msra.mxu0 0.0
    %593 = vmatprep.subr.mxu0 0.0
    %594 = vmatpush1.msra.mxu0 0.0
    %595 = vmatprep.subr.mxu0 0.0
    %596 = vmatpush1.msra.mxu0 0.0
    %597 = vmatprep.subr.mxu0 0.0
    %598 = vmatpush1.msra.mxu0 0.0
    %599 = vmatprep.subr.mxu0 0.0
    %600 = vmatpush1.msra.mxu0 0.0
    %601 = vmatprep.subr.mxu0 0.0
    %602 = vmatpush1.msra.mxu0 0.0
    %603 = vmatprep.subr.mxu0 0.0
    %604 = vmatpush1.msra.mxu0 0.0
    %605 = vmatprep.subr.mxu0 0.0
    %606 = vmatpush1.msra.mxu0 0.0
    %607 = vmatprep.subr.mxu0 0.0
    %608 = vmatpush1.msra.mxu0 0.0
    %609 = vmatprep.mubr.f32.mxu0 0.0
    %610 = vmatmul.mubr.f32.gmra.mrb[0].mxu0 %v473
    %v611 = vpop.f32.mrb[0].mxu0
    %v612 = vadd.f32 %v542, %v611
    %v613 = vpop.f32.mrb[0].mxu0
    %614 = vdwg.mxu0
    %v615 = vadd.f32 %v612, 1e-05
    %v616 = vrsqrt.pop %v615
    %v617 = vmul.f32 %v470, %v616
    %v618 = vld [vmem:[%s5] sm:$0x1]
    %v620 = vlaneseq
    %v621 = vshrl.u32 %v620, 7
    %v622 = vsub.s32 0, %v621
    %v623 = vrot.slane %v618, %v622
    %v625 = vmul.f32 %v617, %v623
    %v626 = vld [vmem:[%s6] sm:$0x1]
    %v628 = vlaneseq
    %v629 = vshrl.u32 %v628, 7
    %v630 = vsub.s32 0, %v629
    %v631 = vrot.slane %v626, %v630
    %v633 = vadd.f32 %v625, %v631
    %634 = vst [vmem:[#allocation10] sm:$0xff] %v633
    // Predicated region
    $region50: #{tpu_custom_call.1} parent=1 // pred_check
      _
    $region51: #{tpu_custom_call.1} parent=1 // pred_check_branch
      %636 = sbr.rel (0) target = $region53
    $region52: #{tpu_custom_call.1} parent=1 // pred_region
      %s638 = ssub.s32 128, 128
      %639 = vsyncadd [#allocation4], %s638
      %s641 = sshll.u32 [#allocation10], 4
      %s642 = int_to_ptr.vmem [resolvable:$true] %s641
      %644 = dma.vmem_to_hbm [thread:$0]  %s642, 128, %s8, [#allocation4]
    $region53: #{tpu_custom_call.1} parent=1 // pred_fallthru
      _
    // Predicated region
    $region54: #{tpu_custom_call.1} parent=1 // pred_check
      _
    $region55: #{tpu_custom_call.1} parent=1 // pred_check_branch
      %646 = sbr.rel (0) target = $region57
    $region56: #{tpu_custom_call.1} parent=1 // pred_region
      %647 = dma.done [#allocation4], 128
    $region57: #{tpu_custom_call.1} parent=1 // pred_fallthru
      _
    %648 = vsyncpa [#allocation3], 1
    %649 = vsyncpa [#allocation6], 1
    %650 = vsyncpa [#allocation9], 1
    %651 = vsyncpa [#allocation4], 1

</llo_original>
